<compile_context>
chip_gen: v5e
topology: v5e:2x2
jax: 0.10.0
libtpu: 0.0.40
codegen_flags: <defaults>
</compile_context>

<pallas_src>
import jax
import jax.numpy as jnp
from jax.experimental import pallas as pl
from jax.experimental.pallas import tpu as pltpu


# ---------------------------------------------------------------------------
# Kernel
# ---------------------------------------------------------------------------
def _make_kernel(bn):
    """Kernel over one (batch-chunk, spatial-tile, K-slab) grid step.

    w_ref:   (Cout, TK)      bf16 flattened conv weight slab
    b_ref:   (Cout, 1)       f32 bias (resident)
    p_ref:   (BN, TK, TM)    bf16 im2col patch tile (lane dim = spatial)
    o_ref:   (BN, Cout, TM)  output tile, flattened-NCHW layout
    acc_ref: (BN, Cout, TM)  f32 accumulator scratch (lives across K steps)
    """

    def kernel(w_ref, b_ref, p_ref, o_ref, acc_ref):
        k = pl.program_id(2)

        @pl.when(k == 0)
        def _():
            acc_ref[...] = jnp.zeros_like(acc_ref)

        w = w_ref[...]
        # Short unrolled loop of 2-D MXU matmuls (BN is small and static).
        for b in range(bn):
            acc_ref[b] += jnp.dot(w, p_ref[b],
                                  preferred_element_type=jnp.float32)

        @pl.when(k == pl.num_programs(2) - 1)
        def _():
            y = acc_ref[...] + b_ref[...]          # (Cout,1) broadcast, f32
            o_ref[...] = jnp.maximum(y, 0.0).astype(o_ref.dtype)

    return kernel


# ---------------------------------------------------------------------------
# Tiling / VMEM policy
# ---------------------------------------------------------------------------
def _round_up(x, m):
    return ((x + m - 1) // m) * m


def _vmem_budget():
    """(vmem_limit_bytes, tile_byte_budget) per TPU generation."""
    phys = 64 * 1024 * 1024                     # conservative default (v7x)
    try:
        info = pltpu.get_tpu_info()
        cap = getattr(info, "vmem_capacity_bytes", None)
        if cap:
            phys = int(cap)
    except Exception:
        pass
    # v5e/v6e (128 MiB physical) -> 96 MiB scoped; v7x (64 MiB) -> 48 MiB.
    vmem_limit = min(96 * 1024 * 1024, (phys * 3) // 4)
    budget = int(vmem_limit * 0.7)              # headroom for compiler scratch
    return vmem_limit, budget


def _select_tiling(N, Cout, K, M_pad, in_b, out_b, budget):
    """Choose (BN, TK, TM, K_pad) under the VMEM byte budget."""

    def fixed_bytes(tk):
        # Weight + bias blocks.  Counted twice: BlockSpec double-buffers even
        # constant-index blocks, so the second weight buffer is real VMEM.
        return 2 * Cout * tk * in_b + 2 * Cout * 4

    def per_lane_bytes(bn, tk):
        # Double-buffered patch + output blocks plus f32 accumulator scratch,
        # per output lane.
        return bn * (2 * tk * in_b + 2 * Cout * out_b + Cout * 4)

    def tm_cap(bn, tk):
        avail = budget - fixed_bytes(tk)
        if avail <= 0:
            return 0
        return (avail // per_lane_bytes(bn, tk)) // 128 * 128

    # --- K residency: keep whole K resident when it leaves room for a
    #     >=128-lane tile; otherwise chunk K in lane-aligned (x128) slabs. ---
    if fixed_bytes(K) <= budget // 2 and tm_cap(1, K) >= 128:
        TK, K_pad = K, K
    else:
        TK = 512
        while TK > 128 and (fixed_bytes(TK) > budget // 2 or tm_cap(1, TK) < 128):
            TK -= 128
        K_pad = _round_up(K, TK)

    # --- TM: largest lane-dense (multiple of 128) divisor of M_pad that fits. ---
    cap = max(128, min(tm_cap(1, TK), M_pad))
    if N == 1 and M_pad >= 256:
        # v7x has 2 TensorCores: make sure at least one "parallel" axis has
        # >= 2 steps even for batch-1 inputs.
        cap = min(cap, max(128, ((M_pad // 2) // 128) * 128))
    TM = 128
    for tm in range(cap, 127, -128):
        if M_pad % tm == 0:
            TM = tm
            break

    # --- BN: amortize per-step overhead when the spatial extent is tiny, but
    #     keep >= 2 batch-chunk steps when N >= 2 (v7x megacore). ---
    BN = 1
    if N >= 2:
        for cand in range(min(N // 2, 8), 1, -1):
            if N % cand == 0 and cand * TM <= 4096 and tm_cap(cand, TK) >= TM:
                BN = cand
                break

    return BN, TK, TM, K_pad


# ---------------------------------------------------------------------------
# Forward wrapper (NCHW in / NCHW out, matching the PyTorch module, eval mode)
# ---------------------------------------------------------------------------
def fc_unit_forward(x_nchw, weight_oihw, bias, padding):
    p = int(padding)
    N, Cin, H0, W0 = x_nchw.shape
    Cout, _, KH, KW = weight_oihw.shape
    H = H0 + 2 * p - KH + 1
    W = W0 + 2 * p - KW + 1
    M = H * W
    K = KH * KW * Cin

    out_dtype = x_nchw.dtype
    in_bytes = 2                                   # bf16 matmul operands
    out_bytes = jnp.dtype(out_dtype).itemsize

    vmem_limit, budget = _vmem_budget()
    M_pad = _round_up(M, 128)                      # lane-dense stores
    BN, TK, TM, K_pad = _select_tiling(N, Cout, K, M_pad,
                                       in_bytes, out_bytes, budget)

    # --- XLA glue: zero-pad + im2col patch matrix (bf16), weight flattening. ---
    x_pad = jnp.pad(x_nchw, ((0, 0), (0, 0), (p, p), (p, p))).astype(jnp.bfloat16)
    cols = [x_pad[:, :, kh:kh + H, kw:kw + W].reshape(N, Cin, M)
            for kh in range(KH) for kw in range(KW)]
    patches = jnp.concatenate(cols, axis=1)        # (N, K, M) bf16
    if M_pad != M or K_pad != K:
        patches = jnp.pad(patches, ((0, 0), (0, K_pad - K), (0, M_pad - M)))

    # Weight K-ordering (kh, kw, c) must match the patch concatenation order.
    w_mat = jnp.transpose(weight_oihw, (0, 2, 3, 1)).reshape(Cout, K)
    w_mat = w_mat.astype(jnp.bfloat16)
    if K_pad != K:
        w_mat = jnp.pad(w_mat, ((0, 0), (0, K_pad - K)))
    b_col = bias.reshape(Cout, 1).astype(jnp.float32)

    grid = (N // BN, M_pad // TM, K_pad // TK)     # (batch, spatial, K) — K last

    out = pl.pallas_call(
        _make_kernel(BN),
        out_shape=jax.ShapeDtypeStruct((N, Cout, M_pad), out_dtype),
        grid_spec=pltpu.PrefetchScalarGridSpec(
            num_scalar_prefetch=0,
            grid=grid,
            in_specs=[
                pl.BlockSpec((Cout, TK), lambda nb, m, k: (0, k)),
                pl.BlockSpec((Cout, 1), lambda nb, m, k: (0, 0)),
                pl.BlockSpec((BN, TK, TM), lambda nb, m, k: (nb, k, m)),
            ],
            out_specs=pl.BlockSpec((BN, Cout, TM), lambda nb, m, k: (nb, 0, m)),
            scratch_shapes=[pltpu.VMEM((BN, Cout, TM), jnp.float32)],
        ),
        compiler_params=pltpu.CompilerParams(
            dimension_semantics=("parallel", "parallel", "arbitrary"),
            vmem_limit_bytes=int(vmem_limit),
        ),
    )(w_mat, b_col, patches)

    # Output is NCHW-flattened (with lane padding): slice + reshape only.
    return out[:, :, :M].reshape(N, Cout, H, W)


# ---------------------------------------------------------------------------
# Pure-JAX reference (lax conv) for correctness checking.
# ---------------------------------------------------------------------------
def _reference_forward(x_nchw, weight_oihw, bias, padding):
    y = jax.lax.conv_general_dilated(
        x_nchw, weight_oihw,
        window_strides=(1, 1),
        padding=[(padding, padding), (padding, padding)],
        dimension_numbers=("NCHW", "OIHW", "NCHW"))
    y = y + bias.reshape(1, -1, 1, 1)
    return jnp.maximum(y, 0.0)


if __name__ == "__main__":
    # Module hyperparameters (small, consistent with fc_unit's __init__).
    in_ch, out_ch = 4, 8
    kernel_size, padding = 3, 1

    key = jax.random.PRNGKey(0)
    kx, kw, kb = jax.random.split(key, 3)

    fan_in = in_ch * kernel_size * kernel_size
    bound = 1.0 / (fan_in ** 0.5)
    weight = jax.random.uniform(kw, (out_ch, in_ch, kernel_size, kernel_size),
                                jnp.float32, -bound, bound)
    bias = jax.random.uniform(kb, (out_ch,), jnp.float32, -bound, bound)

    x = jax.random.normal(kx, (2, in_ch, 16, 16), jnp.float32)

    y = jax.block_until_ready(fc_unit_forward(x, weight, bias, padding))
    y_ref = jax.block_until_ready(_reference_forward(x, weight, bias, padding))

    assert y.shape == (2, out_ch, 16, 16)
    # bf16 matmul operands with f32 accumulation: relaxed tolerance.
    assert jnp.allclose(y, y_ref, atol=2e-2, rtol=2e-2), "mismatch vs reference"

    print("KERNEL_OK")
</pallas_src>

<mosaic_0001>
module attributes {stable_mosaic.version = 11 : i64} {
  func.func @kernel(%arg0: i32, %arg1: i32, %arg2: i32, %arg3: memref<8x36xbf16, #tpu.memory_space<vmem>>, %arg4: memref<8x1xf32, #tpu.memory_space<vmem>>, %arg5: memref<1x36x256xbf16, #tpu.memory_space<vmem>>, %arg6: memref<1x8x256xf32, #tpu.memory_space<vmem>>, %arg7: memref<1x8x256xf32, #tpu.memory_space<vmem>>) attributes {dimension_semantics = [#tpu.dimension_semantics<parallel>, #tpu.dimension_semantics<parallel>, #tpu.dimension_semantics<arbitrary>], iteration_bounds = array<i64: 2, 1, 1>, scalar_prefetch = 0 : i64, scratch_operands = 1 : i64, tpu.core_type = #tpu.core_type<tc>, window_params = [{transform_indices = @transform_0, window_bounds = array<i64: 8, 36>}, {pipeline_mode = #tpu.pipeline_mode<synchronous>, transform_indices = @transform_1, window_bounds = array<i64: 8, 1>}, {transform_indices = @transform_2, window_bounds = array<i64: 1, 36, 256>}, {transform_indices = @transform_3, window_bounds = array<i64: 1, 8, 256>}]} {
    %c0_i32 = arith.constant 0 : i32
    %0 = arith.cmpi eq, %arg2, %c0_i32 : i32
    %1 = arith.extui %0 : i1 to i32
    %c0_i32_0 = arith.constant 0 : i32
    %2 = arith.cmpi ne, %1, %c0_i32_0 : i32
    scf.if %2 {
      %cst_13 = arith.constant 0.000000e+00 : f32
      %16 = vector.broadcast %cst_13 : f32 to vector<1x8x256xf32>
      %c0_14 = arith.constant 0 : index
      %c0_15 = arith.constant 0 : index
      %c0_16 = arith.constant 0 : index
      %17 = vector.load %arg7[%c0_14, %c0_15, %c0_16] : memref<1x8x256xf32, #tpu.memory_space<vmem>>, vector<1x8x256xf32>
      tpu.vector_store %arg7[%c0_14, %c0_15, %c0_16], %16 {strides = array<i32>} : memref<1x8x256xf32, #tpu.memory_space<vmem>>, vector<1x8x256xf32>,
    } else {
    }
    %c0 = arith.constant 0 : index
    %c0_1 = arith.constant 0 : index
    %3 = vector.load %arg3[%c0, %c0_1] : memref<8x36xbf16, #tpu.memory_space<vmem>>, vector<8x36xbf16>
    %c0_2 = arith.constant 0 : index
    %c0_3 = arith.constant 0 : index
    %c0_4 = arith.constant 0 : index
    %4 = vector.load %arg7[%c0_2, %c0_3, %c0_4] : memref<1x8x256xf32, #tpu.memory_space<vmem>>, vector<1x8x256xf32>
    %5 = vector.shape_cast %4 : vector<1x8x256xf32> to vector<8x256xf32>
    %c0_5 = arith.constant 0 : index
    %c0_6 = arith.constant 0 : index
    %c0_7 = arith.constant 0 : index
    %6 = vector.load %arg5[%c0_5, %c0_6, %c0_7] : memref<1x36x256xbf16, #tpu.memory_space<vmem>>, vector<1x36x256xbf16>
    %7 = vector.shape_cast %6 : vector<1x36x256xbf16> to vector<36x256xbf16>
    %cst = arith.constant dense<0.000000e+00> : vector<8x256xf32>
    %8 = tpu.matmul %3, %7, %cst {dimension_numbers = #tpu.dot_dimension_numbers<[1], [0], [0], [1], [0, 0, 1, 1], [], []>} : vector<8x36xbf16>, vector<36x256xbf16>, vector<8x256xf32> -> vector<8x256xf32>
    %9 = arith.addf %5, %8 : vector<8x256xf32>
    %c0_8 = arith.constant 0 : index
    %c0_9 = arith.constant 0 : index
    %c0_10 = arith.constant 0 : index
    %10 = vector.load %arg7[%c0_8, %c0_9, %c0_10] : memref<1x8x256xf32, #tpu.memory_space<vmem>>, vector<1x8x256xf32>
    %11 = vector.shape_cast %10 : vector<1x8x256xf32> to vector<8x256xf32>
    %12 = vector.shape_cast %9 : vector<8x256xf32> to vector<1x8x256xf32>
    tpu.vector_store %arg7[%c0_8, %c0_9, %c0_10], %12 {strides = array<i32>} : memref<1x8x256xf32, #tpu.memory_space<vmem>>, vector<1x8x256xf32>,
    %c0_i32_11 = arith.constant 0 : i32
    %13 = arith.cmpi eq, %arg2, %c0_i32_11 : i32
    %14 = arith.extui %13 : i1 to i32
    %c0_i32_12 = arith.constant 0 : i32
    %15 = arith.cmpi ne, %14, %c0_i32_12 : i32
    scf.if %15 {
      %c0_13 = arith.constant 0 : index
      %c0_14 = arith.constant 0 : index
      %c0_15 = arith.constant 0 : index
      %16 = vector.load %arg7[%c0_13, %c0_14, %c0_15] : memref<1x8x256xf32, #tpu.memory_space<vmem>>, vector<1x8x256xf32>
      %c0_16 = arith.constant 0 : index
      %c0_17 = arith.constant 0 : index
      %17 = vector.load %arg4[%c0_16, %c0_17] : memref<8x1xf32, #tpu.memory_space<vmem>>, vector<8x1xf32>
      %18 = vector.shape_cast %17 : vector<8x1xf32> to vector<1x8x1xf32>
      %19 = vector.broadcast %18 : vector<1x8x1xf32> to vector<1x8x256xf32>
      %20 = arith.addf %16, %19 : vector<1x8x256xf32>
      %cst_18 = arith.constant 0.000000e+00 : f32
      %21 = vector.broadcast %cst_18 : f32 to vector<1x8x256xf32>
      %22 = arith.maximumf %20, %21 : vector<1x8x256xf32>
      %c0_19 = arith.constant 0 : index
      %c0_20 = arith.constant 0 : index
      %c0_21 = arith.constant 0 : index
      %23 = vector.load %arg6[%c0_19, %c0_20, %c0_21] : memref<1x8x256xf32, #tpu.memory_space<vmem>>, vector<1x8x256xf32>
      tpu.vector_store %arg6[%c0_19, %c0_20, %c0_21], %22 {strides = array<i32>} : memref<1x8x256xf32, #tpu.memory_space<vmem>>, vector<1x8x256xf32>,
    } else {
    }
    return
  }
  func.func @transform_0(%arg0: i32, %arg1: i32, %arg2: i32) -> (i32, i32) {
    %c0_i32 = arith.constant 0 : i32
    %c0_i32_0 = arith.constant 0 : i32
    return %c0_i32, %arg2 : i32, i32
  }
  func.func @transform_1(%arg0: i32, %arg1: i32, %arg2: i32) -> (i32, i32) {
    %c0_i32 = arith.constant 0 : i32
    %c0_i32_0 = arith.constant 0 : i32
    %c0_i32_1 = arith.constant 0 : i32
    return %c0_i32, %c0_i32_0 : i32, i32
  }
  func.func @transform_2(%arg0: i32, %arg1: i32, %arg2: i32) -> (i32, i32, i32) {
    %c0_i32 = arith.constant 0 : i32
    return %arg0, %arg2, %arg1 : i32, i32, i32
  }
  func.func @transform_3(%arg0: i32, %arg1: i32, %arg2: i32) -> (i32, i32, i32) {
    %c0_i32 = arith.constant 0 : i32
    %c0_i32_0 = arith.constant 0 : i32
    return %arg0, %c0_i32, %arg1 : i32, i32, i32
  }
}

</mosaic_0001>

<llo_original>
// kernel: tpu_custom_call.1
$region0: #{tpu_custom_call.1}
  #allocation0 [shape = 'u32[]', space=smem, size = 0x4, offset = 0x4, fixed_abs, tag = 'smem constant byte address 0x4 - core index']
  #allocation1 [shape = 'u32[72,128]{1,0:T(1,128)}', space=vmem, size = 0x9000, scoped, tag = 'internal scratch']
  #allocation2 [shape = 'f32[1,8,256]{2,1,0:T(8,128)}', space=vmem, size = 0x2000, scoped, tag = 'scratch operand']
  %s0 = inlined_call_operand.vmem [shape: bf16[8,36], index: 0, kind: input, shape index: {}]
  %s1 = inlined_call_operand.vmem [shape: f32[8,1], index: 1, kind: input, shape index: {}]
  %s2 = inlined_call_operand.vmem [shape: bf16[2,36,256], index: 2, kind: input, shape index: {}]
  %s3 = inlined_call_operand.hbm [shape: f32[2,8,256], index: 3, kind: output, shape index: {}]
  %s4 = sld [smem:[#allocation0]]
  $region53: #{tpu_custom_call.1} parent=0
    _
  %s6 = ssub.s32 1, %s4
  %s7 = scalar_select 0, %s6, %s4
  $region1: #{tpu_custom_call.1} parent=0
    #allocation3 [shape = 'u8[16384]{0}', space=vmem, size = 0x4000, scoped, tag = 'output window, operand 0']
    #allocation4 [shape = 's32[2]{0}', space=sflag, size = 0x8, scoped, tag = 'scoped memory for tpu_custom_call.1']
    %8 = vsyncpa [#allocation4], 0
    %s9 = scalar_lea.sflag [#allocation4], 1
    %10 = vsyncpa %s9, 0
    loop: start=0, step=1, limit=4
    $region2: #{tpu_custom_call.1} parent=1 // loop_pre_header
      _
    $region3: #{tpu_custom_call.1} parent=1 // loop_header
      %s12 = sphi 0, %s16
      %p13 = scmp.ge.s32.totalorder %s12, 4
      %s19 = sphi 0, %s38
      %s20 = sphi 0, %s34
      %s21 = sphi 0, %s30
      %s22 = sphi 0, %s19
      %s23 = sphi 0, %s20
      %s24 = sphi 0, %s21
      %s25 = sphi 0, %s22
      %s26 = sphi 0, %s23
      %s27 = sphi 0, %s24
      %s41 = sphi 0, %s43
      %s44 = sphi 0, %s41
      %s45 = sphi 0, %s44
      %s61 = sphi 0, %s45
      %s65 = sphi 0, %s65
      %s67 = sphi 0, %s65
      %s68 = sphi 0, %s67
      %s82 = sphi 0, %s68
      %s92 = sphi 0, %s94
      %s95 = sphi 0, %s92
      %s96 = sphi 0, %s95
      %s112 = sphi 0, %s96
      %s120 = sphi 0, %s122
      %s123 = sphi 0, %s120
      %s124 = sphi 0, %s123
      %s140 = sphi 0, %s124
    $region4: #{tpu_custom_call.1} parent=1 // loop_header_branch
      %15 = sbr.rel (%p13) target = $region8
    $region5: #{tpu_custom_call.1} parent=1 // loop_body
      %s17 = ssub.s32 %s12, 1
      %s18 = ssub.s32 %s12, 2
      %s28 = sadd.s32 1, %s21
      %p29 = scmp.ge.s32.totalorder %s28, 1
      %s30 = scalar_select %p29, 0, %s28
      %s31 = sadd.s32 1, %s20
      %s32 = scalar_select %p29, %s31, %s20
      %p33 = scmp.ge.s32.totalorder %s32, 1
      %s34 = scalar_select %p33, 0, %s32
      %s35 = sadd.s32 1, %s19
      %s36 = scalar_select %p33, %s35, %s19
      %p37 = scmp.ge.s32.totalorder %s36, 2
      %s38 = scalar_select %p37, 0, %s36
      %s39 = ssub.s32 %s21, %s30
      %p40 = scmp.eq.s32.totalorder %s39, 0
      %s42 = sadd.s32 %s41, 1
      %s43 = scalar_select %p40, %s41, %s42
      %p46 = pneg %p40
      %p47 = scmp.eq.s32.totalorder %s12, 1
      %p48 = por %p46, %p47
      %p49 = scmp.ne.s32.totalorder %s41, %s44
      %p50 = scmp.eq.s32.totalorder %s12, 0
      %p51 = por %p49, %p50
      %p52 = scmp.ne.s32.totalorder %s41, %s44
      %p53 = scmp.eq.s32.totalorder %s17, 1
      %p54 = por %p52, %p53
      %p55 = scmp.ne.s32.totalorder %s44, %s45
      %p56 = scmp.eq.s32.totalorder %s17, 0
      %p57 = por %p55, %p56
      %p58 = scmp.ne.s32.totalorder %s44, %s45
      %p59 = scmp.eq.s32.totalorder %s18, 1
      %p60 = por %p58, %p59
      %p62 = scmp.ne.s32.totalorder %s45, %s61
      %p63 = scmp.eq.s32.totalorder %s18, 0
      %p64 = por %p62, %p63
      %s66 = sadd.s32 %s65, 1
      %p69 = scmp.eq.s32.totalorder %s12, 1
      %p70 = scmp.ne.s32.totalorder %s65, %s67
      %p71 = scmp.eq.s32.totalorder %s12, 0
      %p72 = por %p70, %p71
      %p73 = scmp.ne.s32.totalorder %s65, %s67
      %p74 = scmp.eq.s32.totalorder %s17, 1
      %p75 = por %p73, %p74
      %p76 = scmp.ne.s32.totalorder %s67, %s68
      %p77 = scmp.eq.s32.totalorder %s17, 0
      %p78 = por %p76, %p77
      %p79 = scmp.ne.s32.totalorder %s67, %s68
      %p80 = scmp.eq.s32.totalorder %s18, 1
      %p81 = por %p79, %p80
      %p83 = scmp.ne.s32.totalorder %s68, %s82
      %p84 = scmp.eq.s32.totalorder %s18, 0
      %p85 = por %p83, %p84
      %s86 = ssub.s32 %s19, %s38
      %s87 = ssub.s32 %s21, %s30
      %s88 = sor.u32 %s86, %s87
      %s89 = ssub.s32 %s20, %s34
      %s90 = sor.u32 %s88, %s89
      %p91 = scmp.eq.s32.totalorder %s90, 0
      %s93 = sadd.s32 %s92, 1
      %s94 = scalar_select %p91, %s92, %s93
      %p97 = pneg %p91
      %p98 = scmp.eq.s32.totalorder %s12, 1
      %p99 = por %p97, %p98
      %p100 = scmp.ne.s32.totalorder %s92, %s95
      %p101 = scmp.eq.s32.totalorder %s12, 0
      %p102 = por %p100, %p101
      %p103 = scmp.ne.s32.totalorder %s92, %s95
      %p104 = scmp.eq.s32.totalorder %s17, 1
      %p105 = por %p103, %p104
      %p106 = scmp.ne.s32.totalorder %s95, %s96
      %p107 = scmp.eq.s32.totalorder %s17, 0
      %p108 = por %p106, %p107
      %p109 = scmp.ne.s32.totalorder %s95, %s96
      %p110 = scmp.eq.s32.totalorder %s18, 1
      %p111 = por %p109, %p110
      %p113 = scmp.ne.s32.totalorder %s96, %s112
      %p114 = scmp.eq.s32.totalorder %s18, 0
      %p115 = por %p113, %p114
      %s116 = ssub.s32 %s19, %s38
      %s117 = ssub.s32 %s20, %s34
      %s118 = sor.u32 %s116, %s117
      %p119 = scmp.eq.s32.totalorder %s118, 0
      %s121 = sadd.s32 %s120, 1
      %s122 = scalar_select %p119, %s120, %s121
      %p125 = pneg %p119
      %p126 = scmp.eq.s32.totalorder %s12, 1
      %p127 = por %p125, %p126
      %p128 = scmp.ne.s32.totalorder %s120, %s123
      %p129 = scmp.eq.s32.totalorder %s12, 0
      %p130 = por %p128, %p129
      %p131 = scmp.ne.s32.totalorder %s120, %s123
      %p132 = scmp.eq.s32.totalorder %s17, 1
      %p133 = por %p131, %p132
      %p134 = scmp.ne.s32.totalorder %s123, %s124
      %p135 = scmp.eq.s32.totalorder %s17, 0
      %p136 = por %p134, %p135
      %p137 = scmp.ne.s32.totalorder %s123, %s124
      %p138 = scmp.eq.s32.totalorder %s18, 1
      %p139 = por %p137, %p138
      %p141 = scmp.ne.s32.totalorder %s124, %s140
      %p142 = scmp.eq.s32.totalorder %s18, 0
      %p143 = por %p141, %p142
      %p144 = scmp.le.s32.totalorder 1, %s12
      %p145 = scmp.lt.s32.totalorder %s12, 3
      %p146 = pnand %p144, %p145
      %p147 = pneg %p146
      // Predicated region
      $region9: #{tpu_custom_call.1} parent=5 // pred_check
        _
      $region10: #{tpu_custom_call.1} parent=5 // pred_check_branch
        %149 = sbr.rel (%p146) target = $region12
      $region11: #{tpu_custom_call.1} parent=5 // pred_region
        %s150 = ssub.s32 %s12, 1
        // Predicated region
        $region13: #{tpu_custom_call.1} parent=11 // pred_check
          %p151 = pneg %p57
        $region14: #{tpu_custom_call.1} parent=11 // pred_check_branch
          %153 = sbr.rel (%p151) target = $region16
        $region15: #{tpu_custom_call.1} parent=11 // pred_region
          %p154 = scmp.lt.s32.totalorder %s24, 0
          %s155 = scalar_select %p154, %s24, 0
          %s156 = smul.addr %s155, 4
          %s157 = scalar_lea.vmem %s0, %s156
        $region16: #{tpu_custom_call.1} parent=11 // pred_fallthru
          _
        // Predicated region
        $region17: #{tpu_custom_call.1} parent=11 // pred_check
          %p158 = pneg %p78
        $region18: #{tpu_custom_call.1} parent=11 // pred_check_branch
          %160 = sbr.rel (%p158) target = $region20
        $region19: #{tpu_custom_call.1} parent=11 // pred_region
          _
        $region20: #{tpu_custom_call.1} parent=11 // pred_fallthru
          _
      $region12: #{tpu_custom_call.1} parent=5 // pred_fallthru
        _
      %p161 = scmp.lt.s32.totalorder %s12, 2
      // Predicated region
      $region21: #{tpu_custom_call.1} parent=5 // pred_check
        %p162 = pneg %p161
      $region22: #{tpu_custom_call.1} parent=5 // pred_check_branch
        %164 = sbr.rel (%p162) target = $region24
      $region23: #{tpu_custom_call.1} parent=5 // pred_region
        // Predicated region
        $region25: #{tpu_custom_call.1} parent=23 // pred_check
          %p165 = pneg %p102
        $region26: #{tpu_custom_call.1} parent=23 // pred_check_branch
          %167 = sbr.rel (%p165) target = $region28
        $region27: #{tpu_custom_call.1} parent=23 // pred_region
          %s168 = smul.u32 5, %s21
          %s169 = smul.u32 2, %s20
          %p170 = scmp.lt.s32.totalorder %s19, 1
          %s171 = scalar_select %p170, %s19, 1
          %p172 = scmp.lt.s32.totalorder %s168, 4
          %s173 = scalar_select %p172, %s168, 4
          %p174 = scmp.lt.s32.totalorder %s169, 1
          %s175 = scalar_select %p174, %s169, 1
          %s176 = smul.addr %s173, 2
          %s177 = sadd.s32 %s175, %s176
          %s178 = smul.addr %s171, 10
          %s179 = sadd.s32 %s177, %s178
          %s180 = smul.addr %s179, 4
          %s181 = scalar_lea.vmem %s2, %s180
          %s182 = smul.u32 5, %s21
          %s183 = smul.u32 2, %s20
        $region28: #{tpu_custom_call.1} parent=23 // pred_fallthru
          _
      $region24: #{tpu_custom_call.1} parent=5 // pred_fallthru
        _
      %p184 = scmp.le.s32.totalorder 1, %s12
      %p185 = scmp.lt.s32.totalorder %s12, 3
      %p186 = pnand %p184, %p185
      %p187 = pneg %p186
      // Predicated region
      $region29: #{tpu_custom_call.1} parent=5 // pred_check
        _
      $region30: #{tpu_custom_call.1} parent=5 // pred_check_branch
        %189 = sbr.rel (%p186) target = $region32
      $region31: #{tpu_custom_call.1} parent=5 // pred_region
        %s190 = ssub.s32 %s12, 1
        %p191 = scmp.lt.s32.totalorder %s24, 0
        %s192 = scalar_select %p191, %s24, 0
        %s193 = smul.addr %s192, 4
        %s194 = scalar_lea.vmem %s0, %s193
        %p195 = pneg %p57
        %p196 = pneg %p54
        %p197 = pneg %p78
        %p198 = pneg %p75
        %s199 = smul.u32 5, %s24
        %s200 = smul.u32 2, %s23
        %p201 = scmp.lt.s32.totalorder %s22, 1
        %s202 = scalar_select %p201, %s22, 1
        %p203 = scmp.lt.s32.totalorder %s199, 4
        %s204 = scalar_select %p203, %s199, 4
        %p205 = scmp.lt.s32.totalorder %s200, 1
        %s206 = scalar_select %p205, %s200, 1
        %s207 = smul.addr %s204, 2
        %s208 = sadd.s32 %s206, %s207
        %s209 = smul.addr %s202, 10
        %s210 = sadd.s32 %s208, %s209
        %s211 = smul.addr %s210, 4
        %s212 = scalar_lea.vmem %s2, %s211
        %p213 = pneg %p108
        %p214 = pneg %p105
        %p215 = pneg %p136
        %p216 = pneg %p133
        %s217 = sand.u32 %s123, 1
        %s218 = scalar_lea.sflag [#allocation4], %s217
        %s219 = sand.u32 %s123, 1
        %s220 = smul.addr %s219, 16
        %s221 = scalar_lea.vmem [#allocation3], %s220
        %p222 = scmp.lt.s32.totalorder %s24, 0
        %s223 = scalar_select %p222, %s24, 0
        %s224 = smul.addr %s223, 4
        %s225 = scalar_lea.vmem %s0, %s224
        %s226 = smul.u32 5, %s24
        %s227 = smul.u32 2, %s23
        %p228 = scmp.lt.s32.totalorder %s22, 1
        %s229 = scalar_select %p228, %s22, 1
        %p230 = scmp.lt.s32.totalorder %s226, 4
        %s231 = scalar_select %p230, %s226, 4
        %p232 = scmp.lt.s32.totalorder %s227, 1
        %s233 = scalar_select %p232, %s227, 1
        %s234 = smul.addr %s231, 2
        %s235 = sadd.s32 %s233, %s234
        %s236 = smul.addr %s229, 10
        %s237 = sadd.s32 %s235, %s236
        %s238 = smul.addr %s237, 4
        %s239 = scalar_lea.vmem %s2, %s238
        %s240 = smul.u32 5, %s24
        %s241 = smul.u32 2, %s23
        %s242 = smul.u32 2, %s23
        %p244 = scmp.eq.s32.totalorder %s24, 0
        // Predicated region
        $region33: #{tpu_custom_call.1} parent=31 // pred_check
          %p245 = pneg %p244
        $region34: #{tpu_custom_call.1} parent=31 // pred_check_branch
          %247 = sbr.rel (%p245) target = $region36
        $region35: #{tpu_custom_call.1} parent=31 // pred_region
          %248 = vst [vmem:[#allocation2] sm:$0xff] 0.0
          %249 = vst [vmem:[#allocation2 + $0x8] sm:$0xff] 0.0
        $region36: #{tpu_custom_call.1} parent=31 // pred_fallthru
          _
        %v250 = vld [vmem:[%s225] sm:$0xf]
        %v251 = vld [vmem:[#allocation2] sm:$0xff]
        %v252 = vld [vmem:[#allocation2 + $0x8] sm:$0xff]
        %v253 = vld [vmem:[%s239] sm:$0xff]
        %v254 = vld [vmem:[%s239 + $0x8] sm:$0xff]
        %v255 = vld [vmem:[%s239 + $0x10] sm:$0xff]
        %v256 = vld [vmem:[%s239 + $0x18] sm:$0xff]
        %v257 = vld [vmem:[%s239 + $0x20] sm:$0x33]
        %v263 = vunpack.c.l.b16 %v253
        %v264 = vunpack.c.h.b16 %v253
        %v265 = vunpack.c.l.b16 %v254
        %v266 = vunpack.c.h.b16 %v254
        %v267 = vunpack.c.l.b16 %v255
        %v268 = vunpack.c.h.b16 %v255
        %v269 = vunpack.c.l.b16 %v256
        %v270 = vunpack.c.h.b16 %v256
        %v271 = vunpack.c.l.b16 %v257
        %v272 = vunpack.c.h.b16 %v257
        %v273 = vpack.c.b16 %v265, %v263
        %v274 = vpack.c.b16 %v266, %v264
        %v275 = vpack.c.b16 %v269, %v267
        %v276 = vpack.c.b16 %v270, %v268
        %v277 = vpack.c.b16 %v271, %v271
        %v278 = vpack.c.b16 %v272, %v272
        %vm283 = vcmask 293888
        %v285 = vsel %vm283, %v250, 0
        %vm287 = vcmask 1041408
        %v289 = vsel %vm287, %v277, 0
        %v292 = vsel %vm287, %v278, 0
        %294 = vmatpush.bf16.msra.mxu0 0
        %295 = vmatpush.bf16.msra.mxu0 0
        %296 = vmatpush.bf16.msra.mxu0 0
        %297 = vmatpush.bf16.msra.mxu0 0
        %298 = vmatpush.bf16.msra.mxu0 0
        %299 = vmatpush.bf16.msra.mxu0 %v289
        %300 = vmatpush.bf16.msra.mxu0 %v275
        %301 = vmatpush.bf16.msra.mxu0 %v273
        %302 = vmatmul.bf16.gmra.mxu0 %v285
        %v303 = vpop.f32.mrf.mxu0
        %v304 = vadd.f32 0.0, %v303
        %v305 = vpop.f32.mrf.mxu0
        %306 = vdwg.mxu0
        %307 = vmatpush.bf16.msra.mxu0 0
        %308 = vmatpush.bf16.msra.mxu0 0
        %309 = vmatpush.bf16.msra.mxu0 0
        %310 = vmatpush.bf16.msra.mxu0 0
        %311 = vmatpush.bf16.msra.mxu0 0
        %312 = vmatpush.bf16.msra.mxu0 %v292
        %313 = vmatpush.bf16.msra.mxu0 %v276
        %314 = vmatpush.bf16.msra.mxu0 %v274
        %315 = vmatmul.bf16.gmra.mxu0 %v285
        %v316 = vpop.f32.mrf.mxu0
        %v317 = vadd.f32 0.0, %v316
        %v318 = vpop.f32.mrf.mxu0
        %319 = vdwg.mxu0
        %v320 = vadd.f32 %v251, %v304
        %v321 = vadd.f32 %v252, %v317
        %322 = vst [vmem:[#allocation2] sm:$0xff] %v320
        %323 = vst [vmem:[#allocation2 + $0x8] sm:$0xff] %v321
        // Predicated region
        $region37: #{tpu_custom_call.1} parent=31 // pred_check
          %p324 = pneg %p244
        $region38: #{tpu_custom_call.1} parent=31 // pred_check_branch
          %326 = sbr.rel (%p324) target = $region40
        $region39: #{tpu_custom_call.1} parent=31 // pred_region
          %v327 = vld [vmem:[#allocation2] sm:$0xff]
          %v328 = vld [vmem:[#allocation2 + $0x8] sm:$0xff]
          %v329 = vld [vmem:[%s1] sm:$0xff]
          %331 = vset.pattern.permute.xlu0 0
          %332 = vperm.xlu0 %331, %v329
          %v333 = vpop.permute.xlu0 %332
          %v335 = vadd.f32 %v327, %v333
          %v336 = vadd.f32 %v328, %v333
          %v337 = vmax.f32 %v335, 0.0
          %v338 = vmax.f32 %v336, 0.0
          %339 = vst [vmem:[%s221] sm:$0xff] %v337
          %340 = vst [vmem:[%s221 + $0x8] sm:$0xff] %v338
        $region40: #{tpu_custom_call.1} parent=31 // pred_fallthru
          _
        %s341 = sand.u32 %s123, 1
        %s342 = scalar_lea.sflag [#allocation4], %s341
        %s343 = sand.u32 %s123, 1
        %s344 = smul.addr %s343, 16
        %s345 = scalar_lea.vmem [#allocation3], %s344
        // Predicated region
        $region41: #{tpu_custom_call.1} parent=31 // pred_check
          %p346 = pneg %p133
        $region42: #{tpu_custom_call.1} parent=31 // pred_check_branch
          %348 = sbr.rel (%p346) target = $region44
        $region43: #{tpu_custom_call.1} parent=31 // pred_region
          %s349 = smul.u32 2, %s23
          %351 = vsyncadd %s342, 0
          %s352 = smul.addr %s22, 2
          %s353 = sadd.s32 %s349, %s352
          %s354 = smul.addr %s353, 8
          %s355 = scalar_lea.hbm %s3, %s354
          %s357 = sshll.u32 %s345, 4
          %s358 = int_to_ptr.vmem [resolvable:$true] %s357
          %s359 = sshll.u32 %s355, 4
          %s360 = int_to_ptr.hbm [resolvable:$true] %s359
          %362 = dma.vmem_to_hbm [thread:$0]  %s358, 256, %s360, %s342
        $region44: #{tpu_custom_call.1} parent=31 // pred_fallthru
          _
      $region32: #{tpu_custom_call.1} parent=5 // pred_fallthru
        _
      %p363 = scmp.le.s32.totalorder 2, %s12
      // Predicated region
      $region45: #{tpu_custom_call.1} parent=5 // pred_check
        %p364 = pneg %p363
      $region46: #{tpu_custom_call.1} parent=5 // pred_check_branch
        %366 = sbr.rel (%p364) target = $region48
      $region47: #{tpu_custom_call.1} parent=5 // pred_region
        %s367 = ssub.s32 %s12, 2
        // Predicated region
        $region49: #{tpu_custom_call.1} parent=47 // pred_check
          %p368 = pneg %p139
        $region50: #{tpu_custom_call.1} parent=47 // pred_check_branch
          %370 = sbr.rel (%p368) target = $region52
        $region51: #{tpu_custom_call.1} parent=47 // pred_region
          %s371 = sand.u32 %s124, 1
          %s372 = scalar_lea.sflag [#allocation4], %s371
          %s373 = sand.u32 %s124, 1
          %s374 = smul.addr %s373, 16
          %s375 = scalar_lea.vmem [#allocation3], %s374
          %377 = dma.done %s372, 256
        $region52: #{tpu_custom_call.1} parent=47 // pred_fallthru
          _
      $region48: #{tpu_custom_call.1} parent=5 // pred_fallthru
        _
    $region6: #{tpu_custom_call.1} parent=1 // loop_footer
      %s16 = sadd.s32 1, %s12
    $region7: #{tpu_custom_call.1} parent=1 // loop_footer_branch
      %11 = sbr.rel target = $region3
    $region8: #{tpu_custom_call.1} parent=1 // loop_exit
      _
    %378 = vsyncpa [#allocation4], 1
    %s379 = scalar_lea.sflag [#allocation4], 1
    %380 = vsyncpa %s379, 1

</llo_original>
